<compile_context>
chip_gen: v7x
topology: tpu7x:2x2x1
jax: 0.10.0
libtpu: 0.0.40
codegen_flags: <defaults>
</compile_context>

<pallas_src>
import math

import jax
import jax.numpy as jnp
from jax import lax
from jax.experimental import pallas as pl
from jax.experimental.pallas import tpu as pltpu


def _round_up(x, m):
    return (x + m - 1) // m * m


def _classifier_kernel(x_ref, w_enc_ref, b_enc_ref, w_head_ref, b_head_ref,
                       out_ref, acc_ref):
    """Grid = (batch_tiles, F_tiles). F (axis 1) is the reduction axis."""
    k = pl.program_id(1)

    @pl.when(k == 0)
    def _():
        acc_ref[...] = jnp.zeros_like(acc_ref)

    # Partial encoder GEMM: [tb, tf](bf16) x [D, tf](bf16) contracted on F -> [tb, D] f32.
    # Contracting against the torch-layout [D, F] weight directly (no transpose needed).
    acc_ref[...] += lax.dot_general(
        x_ref[...], w_enc_ref[...],
        dimension_numbers=(((1,), (1,)), ((), ())),
        preferred_element_type=jnp.float32,
    )

    @pl.when(k == pl.num_programs(1) - 1)
    def _():
        # Finalize: bias add + tiny head GEMM + head bias, all in f32, feats stay in VMEM.
        feats = acc_ref[...] + b_enc_ref[...]                      # [tb, D]
        logits = lax.dot_general(
            feats, w_head_ref[...],                                # [tb, D] x [Np, D]
            dimension_numbers=(((1,), (1,)), ((), ())),
            preferred_element_type=jnp.float32,
        ) + b_head_ref[...]                                        # [tb, Np]
        out_ref[...] = logits.astype(out_ref.dtype)


def image_classifier_forward(x_nchw, w_enc, b_enc, w_head, b_head, *, tf=512):
    """Forward pass of ImageClassifier.

    Args:
      x_nchw: [B, C, H, W] float32 input (PyTorch NCHW convention).
      w_enc:  [D, F] encoder weight (torch.nn.Linear layout [out, in], F = C*H*W).
      b_enc:  [D]    encoder bias.
      w_head: [N, D] classification head weight ([out, in]).
      b_head: [N]    classification head bias.
    Returns:
      [B, N] float32 logits.
    """
    B = x_nchw.shape[0]
    F = math.prod(x_nchw.shape[1:])
    D = w_enc.shape[0]
    N = w_head.shape[0]

    # Tile sizes / padded extents (lane axis multiples of 128, sublane multiples of 8).
    tb = 128 if B >= 128 else _round_up(B, 8)      # batch tile
    tf = min(tf, _round_up(F, 128))                # F (reduction) tile
    Bp = _round_up(B, tb)
    Fp = _round_up(F, tf)
    Np = _round_up(N, 128)                         # lane-dense output classes

    # Wrapper glue: flatten, cast the big streams to bf16, zero-pad to tile multiples.
    x_flat = x_nchw.reshape(B, F).astype(jnp.bfloat16)
    x_p = jnp.pad(x_flat, ((0, Bp - B), (0, Fp - F)))
    w_enc_p = jnp.pad(w_enc.astype(jnp.bfloat16), ((0, 0), (0, Fp - F)))   # stays [D, Fp]
    b_enc_2d = b_enc.astype(jnp.float32).reshape(1, D)
    w_head_p = jnp.pad(w_head.astype(jnp.float32), ((0, Np - N), (0, 0)))  # [Np, D]
    b_head_p = jnp.pad(b_head.astype(jnp.float32).reshape(1, N), ((0, 0), (0, Np - N)))

    grid = (Bp // tb, Fp // tf)

    out_p = pl.pallas_call(
        _classifier_kernel,
        out_shape=jax.ShapeDtypeStruct((Bp, Np), jnp.float32),
        grid_spec=pltpu.PrefetchScalarGridSpec(
            num_scalar_prefetch=0,
            grid=grid,
            in_specs=[
                pl.BlockSpec((tb, tf), lambda i, k: (i, k)),   # x tile
                pl.BlockSpec((D, tf), lambda i, k: (0, k)),    # encoder weight tile [D, tf]
                pl.BlockSpec((1, D), lambda i, k: (0, 0)),     # encoder bias (full)
                pl.BlockSpec((Np, D), lambda i, k: (0, 0)),    # head weight (full)
                pl.BlockSpec((1, Np), lambda i, k: (0, 0)),    # head bias (full)
            ],
            out_specs=pl.BlockSpec((tb, Np), lambda i, k: (i, 0)),
            scratch_shapes=[pltpu.VMEM((tb, D), jnp.float32)],  # feature accumulator
        ),
        compiler_params=pltpu.CompilerParams(
            dimension_semantics=("parallel", "arbitrary"),
            vmem_limit_bytes=32 * 1024 * 1024,   # fits v7x's 64 MiB (and v5e/v6e) comfortably
        ),
    )(x_p, w_enc_p, b_enc_2d, w_head_p, b_head_p)

    return out_p[:B, :N]


def _reference_forward_f32(x_nchw, w_enc, b_enc, w_head, b_head):
    B = x_nchw.shape[0]
    x_flat = x_nchw.reshape(B, -1)
    feats = x_flat @ w_enc.T + b_enc
    return feats @ w_head.T + b_head


def _reference_forward_bf16(x_nchw, w_enc, b_enc, w_head, b_head):
    # Matches the kernel's numerics: bf16 encoder GEMM inputs, f32 accumulate + epilogue.
    B = x_nchw.shape[0]
    x_flat = x_nchw.reshape(B, -1).astype(jnp.bfloat16).astype(jnp.float32)
    w = w_enc.astype(jnp.bfloat16).astype(jnp.float32)
    feats = x_flat @ w.T + b_enc
    return feats @ w_head.T + b_head


if __name__ == "__main__":
    # Small shapes consistent with the module's forward:
    #   inputs: [B=2, C=4, H=16, W=16] -> F = 1024, encoder dim D = 32, classes N = 8.
    B, C, H, W = 2, 4, 16, 16
    F = C * H * W
    D = 32
    N = 8

    key = jax.random.PRNGKey(0)
    kx, ke, kbe, kh, kbh = jax.random.split(key, 5)

    x = jax.random.normal(kx, (B, C, H, W), dtype=jnp.float32)
    # Deterministic synthetic parameters (torch.nn.Linear layout: [out, in]).
    w_enc = jax.random.normal(ke, (D, F), dtype=jnp.float32) * 0.02
    b_enc = jax.random.normal(kbe, (D,), dtype=jnp.float32) * 0.02
    w_head = jax.random.normal(kh, (N, D), dtype=jnp.float32) * 0.1
    b_head = jax.random.normal(kbh, (N,), dtype=jnp.float32) * 0.1

    out = image_classifier_forward(x, w_enc, b_enc, w_head, b_head)
    out = jax.block_until_ready(out)
    assert out.shape == (B, N), out.shape

    # Tight check vs. a numerics-matched (bf16-input, f32-accumulate) reference.
    ref_bf16 = _reference_forward_bf16(x, w_enc, b_enc, w_head, b_head)
    assert jnp.allclose(out, ref_bf16, atol=2e-3, rtol=2e-3), (
        "mismatch vs bf16 reference: max abs err "
        f"{float(jnp.max(jnp.abs(out - ref_bf16)))}"
    )

    # Looser sanity check vs. the pure f32 PyTorch-semantics reference.
    ref_f32 = _reference_forward_f32(x, w_enc, b_enc, w_head, b_head)
    assert jnp.allclose(out, ref_f32, atol=5e-2, rtol=5e-2), (
        "mismatch vs f32 reference: max abs err "
        f"{float(jnp.max(jnp.abs(out - ref_f32)))}"
    )

    print("KERNEL_OK")
</pallas_src>

<mosaic_0001>
module attributes {stable_mosaic.version = 11 : i64} {
  func.func @_classifier_kernel(%arg0: i32, %arg1: i32, %arg2: memref<8x512xbf16, #tpu.memory_space<vmem>>, %arg3: memref<32x512xbf16, #tpu.memory_space<vmem>>, %arg4: memref<1x32xf32, #tpu.memory_space<vmem>>, %arg5: memref<128x32xf32, #tpu.memory_space<vmem>>, %arg6: memref<1x128xf32, #tpu.memory_space<vmem>>, %arg7: memref<8x128xf32, #tpu.memory_space<vmem>>, %arg8: memref<8x32xf32, #tpu.memory_space<vmem>>) attributes {dimension_semantics = [#tpu.dimension_semantics<parallel>, #tpu.dimension_semantics<arbitrary>], iteration_bounds = array<i64: 1, 2>, scalar_prefetch = 0 : i64, scratch_operands = 1 : i64, tpu.core_type = #tpu.core_type<tc>, window_params = [{transform_indices = @transform_0, window_bounds = array<i64: 8, 512>}, {transform_indices = @transform_1, window_bounds = array<i64: 32, 512>}, {pipeline_mode = #tpu.pipeline_mode<synchronous>, transform_indices = @transform_2, window_bounds = array<i64: 1, 32>}, {pipeline_mode = #tpu.pipeline_mode<synchronous>, transform_indices = @transform_3, window_bounds = array<i64: 128, 32>}, {pipeline_mode = #tpu.pipeline_mode<synchronous>, transform_indices = @transform_4, window_bounds = array<i64: 1, 128>}, {transform_indices = @transform_5, window_bounds = array<i64: 8, 128>}]} {
    %c0_i32 = arith.constant 0 : i32
    %0 = arith.cmpi eq, %arg1, %c0_i32 : i32
    %1 = arith.extui %0 : i1 to i32
    %c0_i32_0 = arith.constant 0 : i32
    %2 = arith.cmpi ne, %1, %c0_i32_0 : i32
    scf.if %2 {
      %cst_9 = arith.constant 0.000000e+00 : f32
      %12 = vector.broadcast %cst_9 : f32 to vector<8x32xf32>
      %c0_10 = arith.constant 0 : index
      %c0_11 = arith.constant 0 : index
      %13 = vector.load %arg8[%c0_10, %c0_11] : memref<8x32xf32, #tpu.memory_space<vmem>>, vector<8x32xf32>
      tpu.vector_store %arg8[%c0_10, %c0_11], %12 {strides = array<i32>} : memref<8x32xf32, #tpu.memory_space<vmem>>, vector<8x32xf32>,
    } else {
    }
    %c0 = arith.constant 0 : index
    %c0_1 = arith.constant 0 : index
    %3 = vector.load %arg8[%c0, %c0_1] : memref<8x32xf32, #tpu.memory_space<vmem>>, vector<8x32xf32>
    %c0_2 = arith.constant 0 : index
    %c0_3 = arith.constant 0 : index
    %4 = vector.load %arg2[%c0_2, %c0_3] : memref<8x512xbf16, #tpu.memory_space<vmem>>, vector<8x512xbf16>
    %c0_4 = arith.constant 0 : index
    %c0_5 = arith.constant 0 : index
    %5 = vector.load %arg3[%c0_4, %c0_5] : memref<32x512xbf16, #tpu.memory_space<vmem>>, vector<32x512xbf16>
    %cst = arith.constant dense<0.000000e+00> : vector<8x32xf32>
    %6 = tpu.matmul %4, %5, %cst {dimension_numbers = #tpu.dot_dimension_numbers<[1], [1], [0], [0], [0, 0, 1, 0], [], []>} : vector<8x512xbf16>, vector<32x512xbf16>, vector<8x32xf32> -> vector<8x32xf32>
    %7 = arith.addf %3, %6 : vector<8x32xf32>
    %c0_6 = arith.constant 0 : index
    %c0_7 = arith.constant 0 : index
    %8 = vector.load %arg8[%c0_6, %c0_7] : memref<8x32xf32, #tpu.memory_space<vmem>>, vector<8x32xf32>
    tpu.vector_store %arg8[%c0_6, %c0_7], %7 {strides = array<i32>} : memref<8x32xf32, #tpu.memory_space<vmem>>, vector<8x32xf32>,
    %c1_i32 = arith.constant 1 : i32
    %9 = arith.cmpi eq, %arg1, %c1_i32 : i32
    %10 = arith.extui %9 : i1 to i32
    %c0_i32_8 = arith.constant 0 : i32
    %11 = arith.cmpi ne, %10, %c0_i32_8 : i32
    scf.if %11 {
      %c0_9 = arith.constant 0 : index
      %c0_10 = arith.constant 0 : index
      %12 = vector.load %arg8[%c0_9, %c0_10] : memref<8x32xf32, #tpu.memory_space<vmem>>, vector<8x32xf32>
      %c0_11 = arith.constant 0 : index
      %c0_12 = arith.constant 0 : index
      %13 = vector.load %arg4[%c0_11, %c0_12] : memref<1x32xf32, #tpu.memory_space<vmem>>, vector<1x32xf32>
      %14 = vector.broadcast %13 : vector<1x32xf32> to vector<8x32xf32>
      %15 = arith.addf %12, %14 : vector<8x32xf32>
      %c0_13 = arith.constant 0 : index
      %c0_14 = arith.constant 0 : index
      %16 = vector.load %arg5[%c0_13, %c0_14] : memref<128x32xf32, #tpu.memory_space<vmem>>, vector<128x32xf32>
      %cst_15 = arith.constant dense<0.000000e+00> : vector<8x128xf32>
      %17 = tpu.matmul %15, %16, %cst_15 {dimension_numbers = #tpu.dot_dimension_numbers<[1], [1], [0], [0], [0, 0, 1, 0], [], []>} : vector<8x32xf32>, vector<128x32xf32>, vector<8x128xf32> -> vector<8x128xf32>
      %c0_16 = arith.constant 0 : index
      %c0_17 = arith.constant 0 : index
      %18 = vector.load %arg6[%c0_16, %c0_17] : memref<1x128xf32, #tpu.memory_space<vmem>>, vector<1x128xf32>
      %19 = vector.broadcast %18 : vector<1x128xf32> to vector<8x128xf32>
      %20 = arith.addf %17, %19 : vector<8x128xf32>
      %c0_18 = arith.constant 0 : index
      %c0_19 = arith.constant 0 : index
      %21 = vector.load %arg7[%c0_18, %c0_19] : memref<8x128xf32, #tpu.memory_space<vmem>>, vector<8x128xf32>
      tpu.vector_store %arg7[%c0_18, %c0_19], %20 {strides = array<i32>} : memref<8x128xf32, #tpu.memory_space<vmem>>, vector<8x128xf32>,
    } else {
    }
    return
  }
  func.func @transform_0(%arg0: i32, %arg1: i32) -> (i32, i32) {
    %c0_i32 = arith.constant 0 : i32
    return %arg0, %arg1 : i32, i32
  }
  func.func @transform_1(%arg0: i32, %arg1: i32) -> (i32, i32) {
    %c0_i32 = arith.constant 0 : i32
    %c0_i32_0 = arith.constant 0 : i32
    return %c0_i32, %arg1 : i32, i32
  }
  func.func @transform_2(%arg0: i32, %arg1: i32) -> (i32, i32) {
    %c0_i32 = arith.constant 0 : i32
    %c0_i32_0 = arith.constant 0 : i32
    %c0_i32_1 = arith.constant 0 : i32
    return %c0_i32, %c0_i32_0 : i32, i32
  }
  func.func @transform_3(%arg0: i32, %arg1: i32) -> (i32, i32) {
    %c0_i32 = arith.constant 0 : i32
    %c0_i32_0 = arith.constant 0 : i32
    %c0_i32_1 = arith.constant 0 : i32
    return %c0_i32, %c0_i32_0 : i32, i32
  }
  func.func @transform_4(%arg0: i32, %arg1: i32) -> (i32, i32) {
    %c0_i32 = arith.constant 0 : i32
    %c0_i32_0 = arith.constant 0 : i32
    %c0_i32_1 = arith.constant 0 : i32
    return %c0_i32, %c0_i32_0 : i32, i32
  }
  func.func @transform_5(%arg0: i32, %arg1: i32) -> (i32, i32) {
    %c0_i32 = arith.constant 0 : i32
    %c0_i32_0 = arith.constant 0 : i32
    return %arg0, %c0_i32 : i32, i32
  }
}

</mosaic_0001>

<llo_original>
// kernel: tpu_custom_call.1
$region0: #{tpu_custom_call.1}
  #allocation0 [shape = 'u32[]', space=smem, size = 0x4, offset = 0x4, fixed_abs, tag = 'smem constant byte address 0x4 - core index']
  #allocation1 [shape = 'u32[144,128]{1,0:T(1,128)}', space=vmem, size = 0x12000, scoped, tag = 'internal scratch']
  #allocation2 [shape = 'f32[8,32]{1,0:T(8,128)}', space=vmem, size = 0x1000, scoped, tag = 'scratch operand']
  %s0 = inlined_call_operand.vmem [shape: bf16[8,1024], index: 0, kind: input, shape index: {}]
  %s1 = inlined_call_operand.vmem [shape: bf16[32,1024], index: 1, kind: input, shape index: {}]
  %s2 = inlined_call_operand.vmem [shape: f32[1,32], index: 2, kind: input, shape index: {}]
  %s3 = inlined_call_operand.vmem [shape: f32[128,32], index: 3, kind: input, shape index: {}]
  %s4 = inlined_call_operand.vmem [shape: f32[1,128], index: 4, kind: input, shape index: {}]
  %s5 = inlined_call_operand.hbm [shape: f32[8,128], index: 5, kind: output, shape index: {}]
  %s6 = sld [smem:[#allocation0]]
  $region84: #{tpu_custom_call.1} parent=0
    _
  %s8 = ssub.s32 1, %s6
  %s9 = scalar_select 0, %s8, %s6
  $region1: #{tpu_custom_call.1} parent=0
    #allocation3 [shape = 'u8[65536]{0}', space=vmem, size = 0x10000, scoped, tag = 'input window, operand 1']
    #allocation4 [shape = 'u8[4096]{0}', space=vmem, size = 0x1000, scoped, tag = 'output window, operand 0, single buffered']
    #allocation5 [shape = 's32[2]{0}', space=sflag, size = 0x8, scoped, tag = 'scoped memory for tpu_custom_call.1']
    %10 = vsyncpa [#allocation5], 0
    loop: start=0, step=1, limit=4
    $region2: #{tpu_custom_call.1} parent=1 // loop_pre_header
      _
    $region3: #{tpu_custom_call.1} parent=1 // loop_header
      %s12 = sphi 0, %s16
      %p13 = scmp.ge.s32.totalorder %s12, 4
      %s19 = sphi 0, %s31
      %s20 = sphi 0, %s27
      %s21 = sphi 0, %s19
      %s22 = sphi 0, %s20
      %s23 = sphi 0, %s21
      %s24 = sphi 0, %s22
      %s36 = sphi 0, %s38
      %s39 = sphi 0, %s36
      %s40 = sphi 0, %s39
      %s56 = sphi 0, %s40
      %s62 = sphi 0, %s64
      %s65 = sphi 0, %s62
      %s66 = sphi 0, %s65
      %s82 = sphi 0, %s66
      %s86 = sphi 0, %s86
      %s88 = sphi 0, %s86
      %s89 = sphi 0, %s88
      %s103 = sphi 0, %s89
      %s107 = sphi 0, %s107
      %s109 = sphi 0, %s107
      %s110 = sphi 0, %s109
      %s124 = sphi 0, %s110
      %s128 = sphi 0, %s128
      %s130 = sphi 0, %s128
      %s131 = sphi 0, %s130
      %s145 = sphi 0, %s131
      %s151 = sphi 0, %s153
      %s154 = sphi 0, %s151
      %s155 = sphi 0, %s154
      %s171 = sphi 0, %s155
    $region4: #{tpu_custom_call.1} parent=1 // loop_header_branch
      %15 = sbr.rel (%p13) target = $region8
    $region5: #{tpu_custom_call.1} parent=1 // loop_body
      %s17 = ssub.s32 %s12, 1
      %s18 = ssub.s32 %s12, 2
      %s25 = sadd.s32 1, %s20
      %p26 = scmp.ge.s32.totalorder %s25, 2
      %s27 = scalar_select %p26, 0, %s25
      %s28 = sadd.s32 1, %s19
      %s29 = scalar_select %p26, %s28, %s19
      %p30 = scmp.ge.s32.totalorder %s29, 1
      %s31 = scalar_select %p30, 0, %s29
      %s32 = ssub.s32 %s19, %s31
      %s33 = ssub.s32 %s20, %s27
      %s34 = sor.u32 %s32, %s33
      %p35 = scmp.eq.s32.totalorder %s34, 0
      %s37 = sadd.s32 %s36, 1
      %s38 = scalar_select %p35, %s36, %s37
      %p41 = pneg %p35
      %p42 = scmp.eq.s32.totalorder %s12, 1
      %p43 = por %p41, %p42
      %p44 = scmp.ne.s32.totalorder %s36, %s39
      %p45 = scmp.eq.s32.totalorder %s12, 0
      %p46 = por %p44, %p45
      %p47 = scmp.ne.s32.totalorder %s36, %s39
      %p48 = scmp.eq.s32.totalorder %s17, 1
      %p49 = por %p47, %p48
      %p50 = scmp.ne.s32.totalorder %s39, %s40
      %p51 = scmp.eq.s32.totalorder %s17, 0
      %p52 = por %p50, %p51
      %p53 = scmp.ne.s32.totalorder %s39, %s40
      %p54 = scmp.eq.s32.totalorder %s18, 1
      %p55 = por %p53, %p54
      %p57 = scmp.ne.s32.totalorder %s40, %s56
      %p58 = scmp.eq.s32.totalorder %s18, 0
      %p59 = por %p57, %p58
      %s60 = ssub.s32 %s20, %s27
      %p61 = scmp.eq.s32.totalorder %s60, 0
      %s63 = sadd.s32 %s62, 1
      %s64 = scalar_select %p61, %s62, %s63
      %p67 = pneg %p61
      %p68 = scmp.eq.s32.totalorder %s12, 1
      %p69 = por %p67, %p68
      %p70 = scmp.ne.s32.totalorder %s62, %s65
      %p71 = scmp.eq.s32.totalorder %s12, 0
      %p72 = por %p70, %p71
      %p73 = scmp.ne.s32.totalorder %s62, %s65
      %p74 = scmp.eq.s32.totalorder %s17, 1
      %p75 = por %p73, %p74
      %p76 = scmp.ne.s32.totalorder %s65, %s66
      %p77 = scmp.eq.s32.totalorder %s17, 0
      %p78 = por %p76, %p77
      %p79 = scmp.ne.s32.totalorder %s65, %s66
      %p80 = scmp.eq.s32.totalorder %s18, 1
      %p81 = por %p79, %p80
      %p83 = scmp.ne.s32.totalorder %s66, %s82
      %p84 = scmp.eq.s32.totalorder %s18, 0
      %p85 = por %p83, %p84
      %s87 = sadd.s32 %s86, 1
      %p90 = scmp.eq.s32.totalorder %s12, 1
      %p91 = scmp.ne.s32.totalorder %s86, %s88
      %p92 = scmp.eq.s32.totalorder %s12, 0
      %p93 = por %p91, %p92
      %p94 = scmp.ne.s32.totalorder %s86, %s88
      %p95 = scmp.eq.s32.totalorder %s17, 1
      %p96 = por %p94, %p95
      %p97 = scmp.ne.s32.totalorder %s88, %s89
      %p98 = scmp.eq.s32.totalorder %s17, 0
      %p99 = por %p97, %p98
      %p100 = scmp.ne.s32.totalorder %s88, %s89
      %p101 = scmp.eq.s32.totalorder %s18, 1
      %p102 = por %p100, %p101
      %p104 = scmp.ne.s32.totalorder %s89, %s103
      %p105 = scmp.eq.s32.totalorder %s18, 0
      %p106 = por %p104, %p105
      %s108 = sadd.s32 %s107, 1
      %p111 = scmp.eq.s32.totalorder %s12, 1
      %p112 = scmp.ne.s32.totalorder %s107, %s109
      %p113 = scmp.eq.s32.totalorder %s12, 0
      %p114 = por %p112, %p113
      %p115 = scmp.ne.s32.totalorder %s107, %s109
      %p116 = scmp.eq.s32.totalorder %s17, 1
      %p117 = por %p115, %p116
      %p118 = scmp.ne.s32.totalorder %s109, %s110
      %p119 = scmp.eq.s32.totalorder %s17, 0
      %p120 = por %p118, %p119
      %p121 = scmp.ne.s32.totalorder %s109, %s110
      %p122 = scmp.eq.s32.totalorder %s18, 1
      %p123 = por %p121, %p122
      %p125 = scmp.ne.s32.totalorder %s110, %s124
      %p126 = scmp.eq.s32.totalorder %s18, 0
      %p127 = por %p125, %p126
      %s129 = sadd.s32 %s128, 1
      %p132 = scmp.eq.s32.totalorder %s12, 1
      %p133 = scmp.ne.s32.totalorder %s128, %s130
      %p134 = scmp.eq.s32.totalorder %s12, 0
      %p135 = por %p133, %p134
      %p136 = scmp.ne.s32.totalorder %s128, %s130
      %p137 = scmp.eq.s32.totalorder %s17, 1
      %p138 = por %p136, %p137
      %p139 = scmp.ne.s32.totalorder %s130, %s131
      %p140 = scmp.eq.s32.totalorder %s17, 0
      %p141 = por %p139, %p140
      %p142 = scmp.ne.s32.totalorder %s130, %s131
      %p143 = scmp.eq.s32.totalorder %s18, 1
      %p144 = por %p142, %p143
      %p146 = scmp.ne.s32.totalorder %s131, %s145
      %p147 = scmp.eq.s32.totalorder %s18, 0
      %p148 = por %p146, %p147
      %s149 = ssub.s32 %s19, %s31
      %p150 = scmp.eq.s32.totalorder %s149, 0
      %s152 = sadd.s32 %s151, 1
      %s153 = scalar_select %p150, %s151, %s152
      %p156 = pneg %p150
      %p157 = scmp.eq.s32.totalorder %s12, 1
      %p158 = por %p156, %p157
      %p159 = scmp.ne.s32.totalorder %s151, %s154
      %p160 = scmp.eq.s32.totalorder %s12, 0
      %p161 = por %p159, %p160
      %p162 = scmp.ne.s32.totalorder %s151, %s154
      %p163 = scmp.eq.s32.totalorder %s17, 1
      %p164 = por %p162, %p163
      %p165 = scmp.ne.s32.totalorder %s154, %s155
      %p166 = scmp.eq.s32.totalorder %s17, 0
      %p167 = por %p165, %p166
      %p168 = scmp.ne.s32.totalorder %s154, %s155
      %p169 = scmp.eq.s32.totalorder %s18, 1
      %p170 = por %p168, %p169
      %p172 = scmp.ne.s32.totalorder %s155, %s171
      %p173 = scmp.eq.s32.totalorder %s18, 0
      %p174 = por %p172, %p173
      %p175 = scmp.le.s32.totalorder 1, %s12
      %p176 = scmp.lt.s32.totalorder %s12, 3
      %p177 = pnand %p175, %p176
      %p178 = pneg %p177
      // Predicated region
      $region9: #{tpu_custom_call.1} parent=5 // pred_check
        _
      $region10: #{tpu_custom_call.1} parent=5 // pred_check_branch
        %180 = sbr.rel (%p177) target = $region12
      $region11: #{tpu_custom_call.1} parent=5 // pred_region
        %s181 = ssub.s32 %s12, 1
        // Predicated region
        $region13: #{tpu_custom_call.1} parent=11 // pred_check
          %p182 = pneg %p99
        $region14: #{tpu_custom_call.1} parent=11 // pred_check_branch
          %184 = sbr.rel (%p182) target = $region16
        $region15: #{tpu_custom_call.1} parent=11 // pred_region
          _
        $region16: #{tpu_custom_call.1} parent=11 // pred_fallthru
          _
        // Predicated region
        $region17: #{tpu_custom_call.1} parent=11 // pred_check
          %p185 = pneg %p120
        $region18: #{tpu_custom_call.1} parent=11 // pred_check_branch
          %187 = sbr.rel (%p185) target = $region20
        $region19: #{tpu_custom_call.1} parent=11 // pred_region
          _
        $region20: #{tpu_custom_call.1} parent=11 // pred_fallthru
          _
        // Predicated region
        $region21: #{tpu_custom_call.1} parent=11 // pred_check
          %p188 = pneg %p141
        $region22: #{tpu_custom_call.1} parent=11 // pred_check_branch
          %190 = sbr.rel (%p188) target = $region24
        $region23: #{tpu_custom_call.1} parent=11 // pred_region
          _
        $region24: #{tpu_custom_call.1} parent=11 // pred_fallthru
          _
      $region12: #{tpu_custom_call.1} parent=5 // pred_fallthru
        _
      %p191 = scmp.lt.s32.totalorder %s12, 2
      // Predicated region
      $region25: #{tpu_custom_call.1} parent=5 // pred_check
        %p192 = pneg %p191
      $region26: #{tpu_custom_call.1} parent=5 // pred_check_branch
        %194 = sbr.rel (%p192) target = $region28
      $region27: #{tpu_custom_call.1} parent=5 // pred_region
        // Predicated region
        $region29: #{tpu_custom_call.1} parent=27 // pred_check
          %p195 = pneg %p46
        $region30: #{tpu_custom_call.1} parent=27 // pred_check_branch
          %197 = sbr.rel (%p195) target = $region32
        $region31: #{tpu_custom_call.1} parent=27 // pred_region
          %s198 = smul.u32 4, %s20
          %p199 = scmp.lt.s32.totalorder %s19, 0
          %s200 = scalar_select %p199, %s19, 0
          %p201 = scmp.lt.s32.totalorder %s198, 7
          %s202 = scalar_select %p201, %s198, 7
          %s203 = smul.addr %s200, 8
          %s204 = sadd.s32 %s202, %s203
          %s205 = smul.addr %s204, 4
          %s206 = scalar_lea.vmem %s0, %s205
          %s207 = smul.u32 4, %s20
        $region32: #{tpu_custom_call.1} parent=27 // pred_fallthru
          _
        // Predicated region
        $region33: #{tpu_custom_call.1} parent=27 // pred_check
          %p208 = pneg %p72
        $region34: #{tpu_custom_call.1} parent=27 // pred_check_branch
          %210 = sbr.rel (%p208) target = $region36
        $region35: #{tpu_custom_call.1} parent=27 // pred_region
          %s211 = sand.u32 %s62, 1
          %s212 = sand.u32 %s62, 1
          %s213 = smul.addr %s212, 64
          %s214 = scalar_lea.vmem [#allocation3], %s213
          %s215 = smul.u32 4, %s20
          %s216 = smul.addr %s215, 4
          %s217 = scalar_lea.vmem %s1, %s216
          // Predicated region
          $region37: #{tpu_custom_call.1} parent=35 // pred_check
            _
          $region38: #{tpu_custom_call.1} parent=35 // pred_check_branch
            %219 = sbr.rel (0) target = $region40
          $region39: #{tpu_custom_call.1} parent=35 // pred_region
            // Predicated region
            $region41: #{tpu_custom_call.1} parent=39 // pred_check
              _
            $region42: #{tpu_custom_call.1} parent=39 // pred_check_branch
              %221 = sbr.rel (0) target = $region44
            $region43: #{tpu_custom_call.1} parent=39 // pred_region
              loop: start=0, step=1, limit=1
              $region45: #{tpu_custom_call.1} parent=43 // loop_pre_header
                _
              $region46: #{tpu_custom_call.1} parent=43 // loop_header
                %s223 = sphi 0, %s227
                %p224 = scmp.ge.s32.totalorder %s223, 1
                %s228 = sphi %s217, %s217
                %s229 = sphi %s214, %s214
              $region47: #{tpu_custom_call.1} parent=43 // loop_header_branch
                %226 = sbr.rel (%p224) target = $region51
              $region48: #{tpu_custom_call.1} parent=43 // loop_body
                %v230 = vld [vmem:[%s228] sm:$0xff]
                %231 = vst [vmem:[%s229] sm:$0xff] %v230
                %v232 = vld [vmem:[%s228 + $0x8] sm:$0xff]
                %233 = vst [vmem:[%s229 + $0x8] sm:$0xff] %v232
                %v234 = vld [vmem:[%s228 + $0x20] sm:$0xff]
                %235 = vst [vmem:[%s229 + $0x10] sm:$0xff] %v234
                %v236 = vld [vmem:[%s228 + $0x28] sm:$0xff]
                %237 = vst [vmem:[%s229 + $0x18] sm:$0xff] %v236
                %v238 = vld [vmem:[%s228 + $0x40] sm:$0xff]
                %239 = vst [vmem:[%s229 + $0x20] sm:$0xff] %v238
                %v240 = vld [vmem:[%s228 + $0x48] sm:$0xff]
                %241 = vst [vmem:[%s229 + $0x28] sm:$0xff] %v240
                %v242 = vld [vmem:[%s228 + $0x60] sm:$0xff]
                %243 = vst [vmem:[%s229 + $0x30] sm:$0xff] %v242
                %v244 = vld [vmem:[%s228 + $0x68] sm:$0xff]
                %245 = vst [vmem:[%s229 + $0x38] sm:$0xff] %v244
              $region49: #{tpu_custom_call.1} parent=43 // loop_footer
                %s227 = sadd.s32 1, %s223
              $region50: #{tpu_custom_call.1} parent=43 // loop_footer_branch
                %222 = sbr.rel target = $region46
              $region51: #{tpu_custom_call.1} parent=43 // loop_exit
                _
            $region44: #{tpu_custom_call.1} parent=39 // pred_fallthru
              _
            // Predicated region
            $region52: #{tpu_custom_call.1} parent=39 // pred_check
              _
            $region53: #{tpu_custom_call.1} parent=39 // pred_check_branch
              %247 = sbr.rel target = $region55
            $region54: #{tpu_custom_call.1} parent=39 // pred_region
              _
            $region55: #{tpu_custom_call.1} parent=39 // pred_fallthru
              _
          $region40: #{tpu_custom_call.1} parent=35 // pred_fallthru
            _
          %248 = vnop
        $region36: #{tpu_custom_call.1} parent=27 // pred_fallthru
          _
      $region28: #{tpu_custom_call.1} parent=5 // pred_fallthru
        _
      %p249 = scmp.le.s32.totalorder 1, %s12
      %p250 = scmp.lt.s32.totalorder %s12, 3
      %p251 = pnand %p249, %p250
      %p252 = pneg %p251
      // Predicated region
      $region56: #{tpu_custom_call.1} parent=5 // pred_check
        _
      $region57: #{tpu_custom_call.1} parent=5 // pred_check_branch
        %254 = sbr.rel (%p251) target = $region59
      $region58: #{tpu_custom_call.1} parent=5 // pred_region
        %s255 = ssub.s32 %s12, 1
        %s256 = sand.u32 %s65, 1
        %s257 = sand.u32 %s65, 1
        %s258 = smul.addr %s257, 64
        %s259 = scalar_lea.vmem [#allocation3], %s258
        // Predicated region
        $region60: #{tpu_custom_call.1} parent=58 // pred_check
          %p260 = pneg %p78
        $region61: #{tpu_custom_call.1} parent=58 // pred_check_branch
          %262 = sbr.rel (%p260) target = $region63
        $region62: #{tpu_custom_call.1} parent=58 // pred_region
          _
        $region63: #{tpu_custom_call.1} parent=58 // pred_fallthru
          _
        %s263 = smul.u32 4, %s22
        %p264 = scmp.lt.s32.totalorder %s21, 0
        %s265 = scalar_select %p264, %s21, 0
        %p266 = scmp.lt.s32.totalorder %s263, 7
        %s267 = scalar_select %p266, %s263, 7
        %s268 = smul.addr %s265, 8
        %s269 = sadd.s32 %s267, %s268
        %s270 = smul.addr %s269, 4
        %s271 = scalar_lea.vmem %s0, %s270
        %p272 = pneg %p52
        %p273 = pneg %p49
        %s274 = sand.u32 %s65, 1
        %s275 = sand.u32 %s65, 1
        %s276 = smul.addr %s275, 64
        %s277 = scalar_lea.vmem [#allocation3], %s276
        %p278 = pneg %p78
        %p279 = pneg %p75
        %p280 = pneg %p99
        %p281 = pneg %p96
        %p282 = pneg %p120
        %p283 = pneg %p117
        %p284 = pneg %p141
        %p285 = pneg %p138
        %p286 = pneg %p167
        %p287 = pneg %p164
        %s288 = smul.u32 4, %s22
        %p289 = scmp.lt.s32.totalorder %s21, 0
        %s290 = scalar_select %p289, %s21, 0
        %p291 = scmp.lt.s32.totalorder %s288, 7
        %s292 = scalar_select %p291, %s288, 7
        %s293 = smul.addr %s290, 8
        %s294 = sadd.s32 %s292, %s293
        %s295 = smul.addr %s294, 4
        %s296 = scalar_lea.vmem %s0, %s295
        %s297 = smul.u32 4, %s22
        %s298 = smul.u32 4, %s22
        %p300 = scmp.eq.s32.totalorder %s22, 0
        // Predicated region
        $region64: #{tpu_custom_call.1} parent=58 // pred_check
          %p301 = pneg %p300
        $region65: #{tpu_custom_call.1} parent=58 // pred_check_branch
          %303 = sbr.rel (%p301) target = $region67
        $region66: #{tpu_custom_call.1} parent=58 // pred_region
          %vm304 = vcmask 261120
          %305 = vst.msk [vmem:[#allocation2] sm:$0xff] %vm304, 0.0
        $region67: #{tpu_custom_call.1} parent=58 // pred_fallthru
          _
        %v306 = vld [vmem:[#allocation2] sm:$0xff]
        %v307 = vld [vmem:[%s296] sm:$0xff]
        %v308 = vld [vmem:[%s296 + $0x8] sm:$0xff]
        %v309 = vld [vmem:[%s259] sm:$0xff]
        %v310 = vld [vmem:[%s259 + $0x8] sm:$0xff]
        %v311 = vld [vmem:[%s259 + $0x10] sm:$0xff]
        %v312 = vld [vmem:[%s259 + $0x18] sm:$0xff]
        %v313 = vld [vmem:[%s259 + $0x20] sm:$0xff]
        %v314 = vld [vmem:[%s259 + $0x28] sm:$0xff]
        %v315 = vld [vmem:[%s259 + $0x30] sm:$0xff]
        %v316 = vld [vmem:[%s259 + $0x38] sm:$0xff]
        %v319 = vunpack.c.l.b16 %v307
        %v320 = vunpack.c.h.b16 %v307
        %v321 = vunpack.c.l.b16 %v308
        %v322 = vunpack.c.h.b16 %v308
        %v323 = vpack.c.b16 %v319, %v319
        %v324 = vpack.c.b16 %v320, %v320
        %v325 = vpack.c.b16 %v321, %v321
        %v326 = vpack.c.b16 %v322, %v322
        %v339 = vunpack.c.l.b16 %v309
        %v340 = vunpack.c.h.b16 %v309
        %v341 = vunpack.c.l.b16 %v310
        %v342 = vunpack.c.h.b16 %v310
        %v343 = vunpack.c.l.b16 %v311
        %v344 = vunpack.c.h.b16 %v311
        %v345 = vunpack.c.l.b16 %v312
        %v346 = vunpack.c.h.b16 %v312
        %v347 = vunpack.c.l.b16 %v313
        %v348 = vunpack.c.h.b16 %v313
        %v349 = vunpack.c.l.b16 %v314
        %v350 = vunpack.c.h.b16 %v314
        %v351 = vunpack.c.l.b16 %v315
        %v352 = vunpack.c.h.b16 %v315
        %v353 = vunpack.c.l.b16 %v316
        %v354 = vunpack.c.h.b16 %v316
        %v355 = vpack.c.b16 %v343, %v339
        %v356 = vpack.c.b16 %v344, %v340
        %v357 = vpack.c.b16 %v345, %v341
        %v358 = vpack.c.b16 %v346, %v342
        %v359 = vpack.c.b16 %v351, %v347
        %v360 = vpack.c.b16 %v352, %v348
        %v361 = vpack.c.b16 %v353, %v349
        %v362 = vpack.c.b16 %v354, %v350
        %371 = vmatprep.subr.bf16.mxu0 %v356
        %372 = vmatpush1.bf16.xpose.msra.mxu0 %v355
        %373 = vmatprep.subr.bf16.mxu0 %v360
        %374 = vmatpush1.bf16.xpose.msra.mxu0 %v359
        %375 = vmatprep.subr.bf16.mxu0 0
        %376 = vmatpush1.bf16.xpose.msra.mxu0 0
        %377 = vmatprep.subr.bf16.mxu0 0
        %378 = vmatpush1.bf16.xpose.msra.mxu0 0
        %379 = vmatprep.subr.bf16.mxu0 0
        %380 = vmatpush1.bf16.xpose.msra.mxu0 0
        %381 = vmatprep.subr.bf16.mxu0 0
        %382 = vmatpush1.bf16.xpose.msra.mxu0 0
        %383 = vmatprep.subr.bf16.mxu0 0
        %384 = vmatpush1.bf16.xpose.msra.mxu0 0
        %385 = vmatprep.subr.bf16.mxu0 0
        %386 = vmatpush1.bf16.xpose.msra.mxu0 0
        %387 = vmatprep.subr.bf16.mxu0 0
        %388 = vmatpush1.bf16.xpose.msra.mxu0 0
        %389 = vmatprep.subr.bf16.mxu0 0
        %390 = vmatpush1.bf16.xpose.msra.mxu0 0
        %391 = vmatprep.subr.bf16.mxu0 0
        %392 = vmatpush1.bf16.xpose.msra.mxu0 0
        %393 = vmatprep.subr.bf16.mxu0 0
        %394 = vmatpush1.bf16.xpose.msra.mxu0 0
        %395 = vmatprep.subr.bf16.mxu0 0
        %396 = vmatpush1.bf16.xpose.msra.mxu0 0
        %397 = vmatprep.subr.bf16.mxu0 0
        %398 = vmatpush1.bf16.xpose.msra.mxu0 0
        %399 = vmatprep.subr.bf16.mxu0 0
        %400 = vmatpush1.bf16.xpose.msra.mxu0 0
        %401 = vmatprep.subr.bf16.mxu0 0
        %402 = vmatpush1.bf16.xpose.msra.mxu0 0
        %403 = vmatprep.mubr.bf16.mxu0 %v324
        %404 = vmatmul.mubr.bf16.gmra.mrb[0].mxu0 %v323
        %v405 = vpop.f32.mrb[0].mxu0
        %v406 = vadd.f32 0.0, %v405
        %v407 = vpop.f32.mrb[0].mxu0
        %v408 = vpop.f32.mrb[0].mxu0
        %v409 = vpop.f32.mrb[0].mxu0
        %410 = vdwg.mxu0
        %411 = vmatprep.subr.bf16.mxu0 %v358
        %412 = vmatpush1.bf16.xpose.msra.mxu0 %v357
        %413 = vmatprep.subr.bf16.mxu0 %v362
        %414 = vmatpush1.bf16.xpose.msra.mxu0 %v361
        %415 = vmatprep.subr.bf16.mxu0 0
        %416 = vmatpush1.bf16.xpose.msra.mxu0 0
        %417 = vmatprep.subr.bf16.mxu0 0
        %418 = vmatpush1.bf16.xpose.msra.mxu0 0
        %419 = vmatprep.subr.bf16.mxu0 0
        %420 = vmatpush1.bf16.xpose.msra.mxu0 0
        %421 = vmatprep.subr.bf16.mxu0 0
        %422 = vmatpush1.bf16.xpose.msra.mxu0 0
        %423 = vmatprep.subr.bf16.mxu0 0
        %424 = vmatpush1.bf16.xpose.msra.mxu0 0
        %425 = vmatprep.subr.bf16.mxu0 0
        %426 = vmatpush1.bf16.xpose.msra.mxu0 0
        %427 = vmatprep.subr.bf16.mxu0 0
        %428 = vmatpush1.bf16.xpose.msra.mxu0 0
        %429 = vmatprep.subr.bf16.mxu0 0
        %430 = vmatpush1.bf16.xpose.msra.mxu0 0
        %431 = vmatprep.subr.bf16.mxu0 0
        %432 = vmatpush1.bf16.xpose.msra.mxu0 0
        %433 = vmatprep.subr.bf16.mxu0 0
        %434 = vmatpush1.bf16.xpose.msra.mxu0 0
        %435 = vmatprep.subr.bf16.mxu0 0
        %436 = vmatpush1.bf16.xpose.msra.mxu0 0
        %437 = vmatprep.subr.bf16.mxu0 0
        %438 = vmatpush1.bf16.xpose.msra.mxu0 0
        %439 = vmatprep.subr.bf16.mxu0 0
        %440 = vmatpush1.bf16.xpose.msra.mxu0 0
        %441 = vmatprep.subr.bf16.mxu0 0
        %442 = vmatpush1.bf16.xpose.msra.mxu0 0
        %443 = vmatprep.mubr.bf16.mxu0 %v326
        %444 = vmatmul.mubr.bf16.gmra.mrb[0].mxu0 %v325
        %v445 = vpop.f32.mrb[0].mxu0
        %v446 = vadd.f32 %v406, %v445
        %v447 = vpop.f32.mrb[0].mxu0
        %v448 = vpop.f32.mrb[0].mxu0
        %v449 = vpop.f32.mrb[0].mxu0
        %450 = vdwg.mxu0
        %v451 = vadd.f32 %v306, %v446
        %vm452 = vcmask 261120
        %453 = vst.msk [vmem:[#allocation2] sm:$0xff] %vm452, %v451
        %p454 = scmp.eq.s32.totalorder %s22, 1
        // Predicated region
        $region68: #{tpu_custom_call.1} parent=58 // pred_check
          %p455 = pneg %p454
        $region69: #{tpu_custom_call.1} parent=58 // pred_check_branch
          %457 = sbr.rel (%p455) target = $region71
        $region70: #{tpu_custom_call.1} parent=58 // pred_region
          %v458 = vld [vmem:[#allocation2] sm:$0xff]
          %v459 = vld [vmem:[%s2] sm:$0x1]
          %v461 = vlaneseq
          %v462 = vshrl.u32 %v461, 7
          %v463 = vsub.s32 0, %v462
          %v464 = vrot.slane %v459, %v463
          %v466 = vadd.f32 %v458, %v464
          %v467 = vld [vmem:[%s3] sm:$0xff]
          %v468 = vld [vmem:[%s3 + $0x8] sm:$0xff]
          %v469 = vld [vmem:[%s3 + $0x10] sm:$0xff]
          %v470 = vld [vmem:[%s3 + $0x18] sm:$0xff]
          %v471 = vld [vmem:[%s3 + $0x20] sm:$0xff]
          %v472 = vld [vmem:[%s3 + $0x28] sm:$0xff]
          %v473 = vld [vmem:[%s3 + $0x30] sm:$0xff]
          %v474 = vld [vmem:[%s3 + $0x38] sm:$0xff]
          %v475 = vld [vmem:[%s3 + $0x40] sm:$0xff]
          %v476 = vld [vmem:[%s3 + $0x48] sm:$0xff]
          %v477 = vld [vmem:[%s3 + $0x50] sm:$0xff]
          %v478 = vld [vmem:[%s3 + $0x58] sm:$0xff]
          %v479 = vld [vmem:[%s3 + $0x60] sm:$0xff]
          %v480 = vld [vmem:[%s3 + $0x68] sm:$0xff]
          %v481 = vld [vmem:[%s3 + $0x70] sm:$0xff]
          %v482 = vld [vmem:[%s3 + $0x78] sm:$0xff]
          %v483 = vld [vmem:[%s4] sm:$0x1]
          %v485 = vlaneseq
          %v486 = vshrl.u32 %v485, 7
          %v487 = vsub.s32 0, %v486
          %v488 = vrot.slane %v483, %v487
          %v491 = vsel %vm452, %v466, 0
          %v494 = vsel %vm452, %v467, 0
          %v497 = vsel %vm452, %v468, 0
          %v500 = vsel %vm452, %v469, 0
          %v503 = vsel %vm452, %v470, 0
          %v506 = vsel %vm452, %v471, 0
          %v509 = vsel %vm452, %v472, 0
          %v512 = vsel %vm452, %v473, 0
          %v515 = vsel %vm452, %v474, 0
          %v518 = vsel %vm452, %v475, 0
          %v521 = vsel %vm452, %v476, 0
          %v524 = vsel %vm452, %v477, 0
          %v527 = vsel %vm452, %v478, 0
          %v530 = vsel %vm452, %v479, 0
          %v533 = vsel %vm452, %v480, 0
          %v536 = vsel %vm452, %v481, 0
          %v539 = vsel %vm452, %v482, 0
          %541 = vmatprep.subr.mxu0 0.0
          %542 = vmatpush1.xpose.msra.mxu0 %v494
          %543 = vmatprep.subr.mxu0 0.0
          %544 = vmatpush1.xpose.msra.mxu0 %v497
          %545 = vmatprep.subr.mxu0 0.0
          %546 = vmatpush1.xpose.msra.mxu0 %v500
          %547 = vmatprep.subr.mxu0 0.0
          %548 = vmatpush1.xpose.msra.mxu0 %v503
          %549 = vmatprep.subr.mxu0 0.0
          %550 = vmatpush1.xpose.msra.mxu0 %v506
          %551 = vmatprep.subr.mxu0 0.0
          %552 = vmatpush1.xpose.msra.mxu0 %v509
          %553 = vmatprep.subr.mxu0 0.0
          %554 = vmatpush1.xpose.msra.mxu0 %v512
          %555 = vmatprep.subr.mxu0 0.0
          %556 = vmatpush1.xpose.msra.mxu0 %v515
          %557 = vmatprep.subr.mxu0 0.0
          %558 = vmatpush1.xpose.msra.mxu0 %v518
          %559 = vmatprep.subr.mxu0 0.0
          %560 = vmatpush1.xpose.msra.mxu0 %v521
          %561 = vmatprep.subr.mxu0 0.0
          %562 = vmatpush1.xpose.msra.mxu0 %v524
          %563 = vmatprep.subr.mxu0 0.0
          %564 = vmatpush1.xpose.msra.mxu0 %v527
          %565 = vmatprep.subr.mxu0 0.0
          %566 = vmatpush1.xpose.msra.mxu0 %v530
          %567 = vmatprep.subr.mxu0 0.0
          %568 = vmatpush1.xpose.msra.mxu0 %v533
          %569 = vmatprep.subr.mxu0 0.0
          %570 = vmatpush1.xpose.msra.mxu0 %v536
          %571 = vmatprep.subr.mxu0 0.0
          %572 = vmatpush1.xpose.msra.mxu0 %v539
          %573 = vmatprep.subr.mxu0 0.0
          %574 = vmatpush1.xpose.msra.mxu0 0.0
          %575 = vmatprep.subr.mxu0 0.0
          %576 = vmatpush1.xpose.msra.mxu0 0.0
          %577 = vmatprep.subr.mxu0 0.0
          %578 = vmatpush1.xpose.msra.mxu0 0.0
          %579 = vmatprep.subr.mxu0 0.0
          %580 = vmatpush1.xpose.msra.mxu0 0.0
          %581 = vmatprep.subr.mxu0 0.0
          %582 = vmatpush1.xpose.msra.mxu0 0.0
          %583 = vmatprep.subr.mxu0 0.0
          %584 = vmatpush1.xpose.msra.mxu0 0.0
          %585 = vmatprep.subr.mxu0 0.0
          %586 = vmatpush1.xpose.msra.mxu0 0.0
          %587 = vmatprep.subr.mxu0 0.0
          %588 = vmatpush1.xpose.msra.mxu0 0.0
          %589 = vmatprep.subr.mxu0 0.0
          %590 = vmatpush1.xpose.msra.mxu0 0.0
          %591 = vmatprep.subr.mxu0 0.0
          %592 = vmatpush1.xpose.msra.mxu0 0.0
          %593 = vmatprep.subr.mxu0 0.0
          %594 = vmatpush1.xpose.msra.mxu0 0.0
          %595 = vmatprep.subr.mxu0 0.0
          %596 = vmatpush1.xpose.msra.mxu0 0.0
          %597 = vmatprep.subr.mxu0 0.0
          %598 = vmatpush1.xpose.msra.mxu0 0.0
          %599 = vmatprep.subr.mxu0 0.0
          %600 = vmatpush1.xpose.msra.mxu0 0.0
          %601 = vmatprep.subr.mxu0 0.0
          %602 = vmatpush1.xpose.msra.mxu0 0.0
          %603 = vmatprep.subr.mxu0 0.0
          %604 = vmatpush1.xpose.msra.mxu0 0.0
          %605 = vmatprep.mubr.f32.mxu0 0.0
          %606 = vmatmul.mubr.f32.gmra.mrb[0].mxu0 %v491
          %v607 = vpop.f32.mrb[0].mxu0
          %v608 = vadd.f32 %v488, %v607
          %v609 = vpop.f32.mrb[0].mxu0
          %610 = vdwg.mxu0
          %611 = vst [vmem:[#allocation4] sm:$0xff] %v608
        $region71: #{tpu_custom_call.1} parent=58 // pred_fallthru
          _
        // Predicated region
        $region72: #{tpu_custom_call.1} parent=58 // pred_check
          %p612 = pneg %p164
        $region73: #{tpu_custom_call.1} parent=58 // pred_check_branch
          %614 = sbr.rel (%p612) target = $region75
        $region74: #{tpu_custom_call.1} parent=58 // pred_region
          %s616 = ssub.s32 128, 128
          %617 = vsyncadd [#allocation5], %s616
          %s618 = smul.addr %s21, 128
          %s619 = scalar_lea.hbm %s5, %s618
          %s621 = sshll.u32 [#allocation4], 4
          %s622 = int_to_ptr.vmem [resolvable:$true] %s621
          %624 = dma.vmem_to_hbm [thread:$0]  %s622, 128, %s619, [#allocation5]
        $region75: #{tpu_custom_call.1} parent=58 // pred_fallthru
          _
        // Predicated region
        $region76: #{tpu_custom_call.1} parent=58 // pred_check
          %p625 = pneg %p164
        $region77: #{tpu_custom_call.1} parent=58 // pred_check_branch
          %627 = sbr.rel (%p625) target = $region79
        $region78: #{tpu_custom_call.1} parent=58 // pred_region
          %628 = dma.done [#allocation5], 128
        $region79: #{tpu_custom_call.1} parent=58 // pred_fallthru
          _
      $region59: #{tpu_custom_call.1} parent=5 // pred_fallthru
        _
      %p629 = scmp.le.s32.totalorder 2, %s12
      // Predicated region
      $region80: #{tpu_custom_call.1} parent=5 // pred_check
        %p630 = pneg %p629
      $region81: #{tpu_custom_call.1} parent=5 // pred_check_branch
        %632 = sbr.rel (%p630) target = $region83
      $region82: #{tpu_custom_call.1} parent=5 // pred_region
        %s633 = ssub.s32 %s12, 2
      $region83: #{tpu_custom_call.1} parent=5 // pred_fallthru
        _
    $region6: #{tpu_custom_call.1} parent=1 // loop_footer
      %s16 = sadd.s32 1, %s12
    $region7: #{tpu_custom_call.1} parent=1 // loop_footer_branch
      %11 = sbr.rel target = $region3
    $region8: #{tpu_custom_call.1} parent=1 // loop_exit
      _
    %634 = vsyncpa [#allocation5], 1
    %s635 = scalar_lea.sflag [#allocation5], 1
    %636 = vsyncpa %s635, 1

</llo_original>
